<compile_context>
chip_gen: v7x
topology: tpu7x:2x2x1
jax: 0.10.0
libtpu: 0.0.40
codegen_flags: <defaults>
</compile_context>

<pallas_src>
import numpy as np
import jax
import jax.numpy as jnp
from jax.experimental import pallas as pl
from jax.experimental.pallas import tpu as pltpu


# ----------------------------------------------------------------------------
# Host-side index bookkeeping (matches torch get_offset_scale / pad_select)
# ----------------------------------------------------------------------------
def get_offset_scale(ori_size, dst_size, kernel_size):
    h_in, w_in = ori_size
    h_out, w_out = dst_size
    indice_h = np.arange(1, h_out + 1, dtype=np.float32)
    indice_w = np.arange(1, w_out + 1, dtype=np.float32)
    scaleh = float(h_out) / float(h_in)
    scalew = float(w_out) / float(w_in)
    center_h = indice_h / scaleh + 0.5 * (1 - 1 / scaleh) - 1.0
    center_w = indice_w / scalew + 0.5 * (1 - 1 / scalew) - 1.0
    ih = np.floor(center_h)
    iw = np.floor(center_w)
    start_ind = -((kernel_size - 1) // 2)
    ih = ih.reshape(-1, 1) + np.arange(start_ind, kernel_size + start_ind)
    iw = iw.reshape(-1, 1) + np.arange(start_ind, kernel_size + start_ind)
    ind_left_h = np.floor(ih).reshape(-1)
    ind_left_w = np.floor(iw).reshape(-1)
    mh, mw = np.meshgrid(ind_left_h, ind_left_w, indexing="ij")
    indice = np.stack([mh, mw], axis=-1)
    indice = indice.reshape(h_out, kernel_size, w_out, kernel_size, 2)
    indice = indice.transpose(0, 2, 1, 3, 4)
    ch, cw = np.meshgrid(center_h, center_w, indexing="ij")
    center_hw = np.stack([ch, cw], axis=-1).reshape(h_out, w_out, 1, 1, 2)
    offset = indice[:, :, -start_ind:-start_ind + 1,
                    -start_ind:-start_ind + 1] - center_hw
    sh = np.ones([h_out, w_out, 1, 1, 1], np.float32) * scaleh
    sw = np.ones([h_out, w_out, 1, 1, 1], np.float32) * scalew
    offset_scale = np.concatenate([offset, sh, sw], axis=-1)
    offset_scale = offset_scale.transpose(4, 0, 1, 2, 3).astype(np.float32)
    return offset_scale, indice.astype(np.int64), center_hw


def pad_select_nchw(tensor, indice, pad_width):
    if pad_width > 0:
        tensor = jnp.pad(
            tensor,
            ((0, 0), (0, 0), (pad_width, pad_width), (pad_width, pad_width)),
            mode="reflect",
        )
    return tensor[:, :, indice[..., 0] + pad_width, indice[..., 1] + pad_width]


# ----------------------------------------------------------------------------
# Per-generation tiling / VMEM configuration
# ----------------------------------------------------------------------------
def _chip_config():
    """Returns (pixel-tile cap, vmem_limit_bytes, min parallel grid steps)."""
    kind = ""
    try:
        kind = jax.devices()[0].device_kind.lower()
    except Exception:
        pass
    if "v5" in kind or "v6" in kind:
        # 128 MiB physical VMEM, single TensorCore per chip.
        return 4096, 96 * 1024 * 1024, 1
    if "v7" in kind:
        # 64 MiB VMEM per TC, 2 TCs: keep several grid steps so the
        # "parallel" axis actually shards across both cores.
        return 2048, 48 * 1024 * 1024, 4
    # Conservative default for unknown parts.
    return 2048, 48 * 1024 * 1024, 1


def _pick_tm(n, tm_cap, min_steps=1):
    """Lane tile size: full n if it fits, else a multiple of 128 <= cap."""
    tm = n if n <= tm_cap else tm_cap
    # Shrink (powers of two only) to expose enough grid steps for multi-core
    # sharding, but never below 256 lanes.
    while pl.cdiv(n, tm) < min_steps and tm >= 512 and tm % 256 == 0:
        tm //= 2
    if tm != n and tm % 128 != 0:
        tm = max(128, (tm // 128) * 128)
    return tm


# ----------------------------------------------------------------------------
# Pallas kernels
# ----------------------------------------------------------------------------
def pallas_matmul_bias_t(w, x, b, tm_cap=2048, vmem_limit=48 * 1024 * 1024,
                         min_steps=1):
    """Column-major matmul+bias:  w:(n,k) @ x:(k,m) + b:(n,1) -> (n,m) f32.

    Tiled over the pixel axis m ("parallel" grid axis, lane-dense output),
    weights/bias stay resident.  w/x may be bf16 (f32 accumulation).
    """
    n, k = w.shape
    _, m = x.shape
    tm = _pick_tm(m, tm_cap, min_steps)
    grid = (pl.cdiv(m, tm),)

    def kernel(w_ref, x_ref, b_ref, o_ref):
        o_ref[...] = (
            jnp.dot(w_ref[...], x_ref[...], preferred_element_type=jnp.float32)
            + b_ref[...]
        )

    return pl.pallas_call(
        kernel,
        out_shape=jax.ShapeDtypeStruct((n, m), jnp.float32),
        grid=grid,
        in_specs=[
            pl.BlockSpec((n, k), lambda i: (0, 0)),
            pl.BlockSpec((k, tm), lambda i: (0, i)),
            pl.BlockSpec((n, 1), lambda i: (0, 0)),
        ],
        out_specs=pl.BlockSpec((n, tm), lambda i: (0, i)),
        compiler_params=pltpu.CompilerParams(
            dimension_semantics=("parallel",),
            vmem_limit_bytes=vmem_limit),
    )(w, x, b)


def pallas_taus_head(osf_t, sel_t, hp, out_channel, ckk,
                     tm_cap=2048, vmem_limit=48 * 1024 * 1024, min_steps=1):
    """Fused offscale2weight MLP + slice_mul + tanh (transposed layout).

    osf_t: [din, N] f32  per-pixel transformed features + offset/scale
    sel_t: [ckk, N] bf16 gathered LR taps (rows ordered c, kh, kw)
    returns [out_channel, N] f32 (tanh applied), lane-dense in N.
    """
    din, n = osf_t.shape
    dout = hp["w3b"].shape[0]
    d8 = hp["w12b"].shape[0] // 2
    mm_dtype = hp["w3b"].dtype
    tm = _pick_tm(n, tm_cap, min_steps)
    grid = (pl.cdiv(n, tm),)

    def kernel(osf_ref, sel_ref, w12a, b12a, w12b, b12b,
               w3a_hi, w3a_lo, b3a, w3b, b3b, g_ref, out_ref):
        x = osf_ref[...]                                          # (din, tm)
        # linear1/linear2 front Linears fused into one K=din matmul; their
        # second Linears fused into one block-diagonal matmul.
        f12 = jnp.tanh(
            jnp.dot(w12a[...], x, preferred_element_type=jnp.float32)
            + b12a[...])                                          # (2*d8, tm)
        f12 = (jnp.dot(w12b[...], f12, preferred_element_type=jnp.float32)
               + b12b[...])
        f1 = f12[:d8, :]
        f2 = f12[d8:, :]
        # linear3 input is tanh(concat([f1*f2, f1])); the concat is
        # eliminated by splitting w3a into its two K=d8 halves (bf16 MXU).
        t12 = jnp.tanh(f1 * f2).astype(mm_dtype)
        t1 = jnp.tanh(f1).astype(mm_dtype)
        h = (jnp.dot(w3a_hi[...], t12, preferred_element_type=jnp.float32)
             + jnp.dot(w3a_lo[...], t1, preferred_element_type=jnp.float32)
             + b3a[...])
        h = jnp.maximum(h, 0.01 * h)                              # LeakyReLU
        # dominant matmul in bf16 (f32 accumulation)
        wk = (jnp.dot(w3b[...], h.astype(mm_dtype),
                      preferred_element_type=jnp.float32)
              + b3b[...])                                         # (dout, tm)
        # slice_mul: broadcast the taps over the out_channel groups via a
        # layout-free sublane split (no jnp.tile / no extra (dout,tm) temp),
        # then one small MXU contraction against the 0/1 selector G.
        s = sel_ref[...].astype(jnp.float32)                      # (ckk, tm)
        prod = (wk.reshape(out_channel, ckk, wk.shape[-1])
                * s[None, :, :]).reshape(dout, wk.shape[-1])
        res = jnp.dot(g_ref[...], prod,
                      preferred_element_type=jnp.float32)         # (oc, tm)
        out_ref[...] = jnp.tanh(res)

    weight_args = [
        hp["w12a"], hp["b12a"], hp["w12b"], hp["b12b"],
        hp["w3a_hi"], hp["w3a_lo"], hp["b3a"],
        hp["w3b"], hp["b3b"], hp["G"],
    ]
    w_specs = [pl.BlockSpec(a.shape, lambda i: (0, 0)) for a in weight_args]

    return pl.pallas_call(
        kernel,
        out_shape=jax.ShapeDtypeStruct((out_channel, n), jnp.float32),
        grid=grid,
        in_specs=[
            pl.BlockSpec((din, tm), lambda i: (0, i)),
            pl.BlockSpec((ckk, tm), lambda i: (0, i)),
        ] + w_specs,
        out_specs=pl.BlockSpec((out_channel, tm), lambda i: (0, i)),
        compiler_params=pltpu.CompilerParams(
            dimension_semantics=("parallel",),
            vmem_limit_bytes=vmem_limit),
    )(osf_t, sel_t, *weight_args)


# ----------------------------------------------------------------------------
# Parameter init (deterministic, synthetic) + kernel-layout preparation
# ----------------------------------------------------------------------------
def init_params(key, in_channel, out_channel, kernel_size):
    ftd = in_channel // 2
    din = 4 + ftd
    dout = in_channel * out_channel * kernel_size ** 2
    d8, d4, d2 = dout // 8, dout // 4, dout // 2
    keys = jax.random.split(key, 8)

    def lin(k, di, do):
        k1, k2 = jax.random.split(k)
        lim = 1.0 / np.sqrt(di)
        W = jax.random.uniform(k1, (di, do), jnp.float32, -lim, lim)
        b = jax.random.uniform(k2, (1, do), jnp.float32, -lim, lim)
        return W, b

    p = {}
    p["w1a"], p["b1a"] = lin(keys[0], din, d8)
    p["w1b"], p["b1b"] = lin(keys[1], d8, d8)
    p["w2a"], p["b2a"] = lin(keys[2], din, d8)
    p["w2b"], p["b2b"] = lin(keys[3], d8, d8)
    p["w3a"], p["b3a"] = lin(keys[4], d4, d2)
    p["w3b"], p["b3b"] = lin(keys[5], d2, dout)
    # feature_trans conv: Conv2d(in_channel, ftd, kernel=4, stride=1, pad=0)
    limc = 1.0 / np.sqrt(in_channel * kernel_size * kernel_size)
    p["conv_w"] = jax.random.uniform(
        keys[6], (ftd, in_channel, 4, 4), jnp.float32, -limc, limc)
    p["conv_b"] = jax.random.uniform(keys[7], (ftd,), jnp.float32, -limc, limc)
    return p


def prepare_head_params(p, in_channel, out_channel, kernel_size,
                        matmul_dtype=jnp.bfloat16):
    """Transpose / stack / split / cast the MLP weights into kernel layout."""
    dout = in_channel * out_channel * kernel_size ** 2
    d8 = dout // 8
    ckk = in_channel * kernel_size ** 2
    w1a, w2a = p["w1a"].T, p["w2a"].T          # (d8, din)
    w1b, w2b = p["w1b"].T, p["w2b"].T          # (d8, d8)
    z = jnp.zeros((d8, d8), jnp.float32)
    hp = {
        # linear1/linear2 first Linears stacked (they share the same input)
        "w12a": jnp.concatenate([w1a, w2a], axis=0),               # (2*d8, din)
        "b12a": jnp.concatenate([p["b1a"].reshape(-1, 1),
                                 p["b2a"].reshape(-1, 1)], axis=0),
        # their second Linears as one block-diagonal matmul
        "w12b": jnp.concatenate(
            [jnp.concatenate([w1b, z], axis=1),
             jnp.concatenate([z, w2b], axis=1)], axis=0),          # (2d8, 2d8)
        "b12b": jnp.concatenate([p["b1b"].reshape(-1, 1),
                                 p["b2b"].reshape(-1, 1)], axis=0),
        # first d8 rows of w3a act on f1*f2, last d8 rows act on f1
        "w3a_hi": p["w3a"][:d8].T.astype(matmul_dtype),
        "w3a_lo": p["w3a"][d8:].T.astype(matmul_dtype),
        "b3a": p["b3a"].reshape(-1, 1),
        "w3b": p["w3b"].T.astype(matmul_dtype),
        "b3b": p["b3b"].reshape(-1, 1),
        # 0/1 block selector: res[o, :] = sum_t prod[o*ckk + t, :]
        # (kept f32: the contraction is tiny and sums raw LR pixel taps)
        "G": jnp.asarray(np.kron(np.eye(out_channel, dtype=np.float32),
                                 np.ones((1, ckk), np.float32))),
    }
    return hp


# ----------------------------------------------------------------------------
# Full TAUS forward
# ----------------------------------------------------------------------------
def taus_forward(lr_features, kernel_pc, dst_size, params, out_channel,
                 kernel_size=4, matmul_dtype=jnp.bfloat16):
    # NOTE: kernel_pc and self.kpc_trans are never used in the reference
    # forward(); kept as an argument for interface fidelity only.
    del kernel_pc
    bs, cn, h_in, w_in = lr_features.shape
    h_out, w_out = dst_size
    n_pix = bs * h_out * w_out
    ckk = cn * kernel_size * kernel_size
    ftd = cn // 2
    tm_cap, vmem_limit, min_steps = _chip_config()

    offset_scale, indice, center_hw = get_offset_scale(
        [h_in, w_in], [h_out, w_out], kernel_size)
    center_ind = np.floor(center_hw).astype(np.int64)[:, :, 0, 0, :]  # (h,w,2)

    min_ind_lu = int(indice.min())
    min_ind_rl = int(max(indice[..., 0].max() - h_in + 1,
                         indice[..., 1].max() - w_in + 1))
    pad_width = int(max(max(-min_ind_lu, min_ind_rl), 0))

    # --- gathered LR pixels, tap-major: [ckk, N], taps ordered (c, kh, kw).
    # Streamed as bf16: dominant HBM input of the head kernel.
    selected = pad_select_nchw(lr_features, indice, pad_width)
    sel_t = selected.transpose(1, 4, 5, 0, 2, 3).reshape(ckk, n_pix)
    sel_t = sel_t.astype(jnp.bfloat16)

    # --- feature_trans 4x4 conv: im2col (tap-major, bf16) + tiled Pallas
    # matmul.  TODO(synk): for production resolutions replace the 16-way
    # im2col slab with a windowed Pallas conv accumulating over a (kh,kw)
    # "arbitrary" grid axis on the padded input.
    xp = jnp.pad(lr_features, ((0, 0), (0, 0), (1, 2), (1, 2)), mode="reflect")
    slices = [xp[:, :, kh:kh + h_in, kw:kw + w_in]
              for kh in range(4) for kw in range(4)]
    patch = jnp.stack(slices, axis=2)                      # (bs, cn, 16, H, W)
    patch_t = patch.transpose(1, 2, 0, 3, 4).reshape(cn * 16, bs * h_in * w_in)
    patch_t = patch_t.astype(jnp.bfloat16)
    wc = params["conv_w"].reshape(ftd, cn * 16).astype(jnp.bfloat16)
    bc = params["conv_b"].reshape(ftd, 1)
    ft_t = pallas_matmul_bias_t(wc, patch_t, bc, tm_cap, vmem_limit,
                                min_steps)                 # (ftd, bs*H*W) f32
    ftc = ft_t.reshape(ftd, bs, h_in, w_in)

    # --- transformed features gathered at the (floored) upsample centers ---
    if pad_width > 0:
        ftc = jnp.pad(ftc, ((0, 0), (0, 0),
                            (pad_width, pad_width), (pad_width, pad_width)),
                      mode="reflect")
    sr_t = ftc[:, :, center_ind[..., 0] + pad_width,
               center_ind[..., 1] + pad_width]             # (ftd, bs, h, w)

    osf4 = jnp.asarray(offset_scale[:, :, :, 0, 0], jnp.float32)  # (4, h, w)
    osf4 = jnp.broadcast_to(osf4[:, None], (4, bs, h_out, w_out))
    osf_t = jnp.concatenate([sr_t, osf4], axis=0).reshape(ftd + 4, n_pix)

    head_params = prepare_head_params(params, cn, out_channel, kernel_size,
                                      matmul_dtype=matmul_dtype)
    out_t = pallas_taus_head(osf_t, sel_t, head_params, out_channel, ckk,
                             tm_cap, vmem_limit, min_steps)
    sr_res = out_t.reshape(out_channel, bs, h_out, w_out).transpose(1, 0, 2, 3)
    return sr_res  # [bs, out_channel, h_out, w_out], tanh applied in-kernel


if __name__ == "__main__":
    bs, cn, h_in, w_in = 2, 4, 8, 8
    out_channel, kernel_size, kpc_channels = 4, 4, 10
    dst_size = (16, 16)

    key = jax.random.PRNGKey(0)
    k1, k2 = jax.random.split(key)
    lr_features = jax.random.normal(k1, (bs, cn, h_in, w_in), jnp.float32)
    kernel_pc = jax.random.normal(k2, (bs, kpc_channels, h_in, w_in), jnp.float32)

    params = init_params(jax.random.PRNGKey(42), cn, out_channel, kernel_size)

    out = taus_forward(lr_features, kernel_pc, dst_size, params,
                       out_channel, kernel_size)
    jax.block_until_ready(out)
    assert out.shape == (bs, out_channel, dst_size[0], dst_size[1])
    print("KERNEL_OK")
</pallas_src>

<mosaic_0001>
module attributes {stable_mosaic.version = 11 : i64} {
  func.func @kernel(%arg0: i32, %arg1: memref<2x64xbf16, #tpu.memory_space<vmem>>, %arg2: memref<64x128xbf16, #tpu.memory_space<vmem>>, %arg3: memref<2x1xf32, #tpu.memory_space<vmem>>, %arg4: memref<2x128xf32, #tpu.memory_space<vmem>>) attributes {dimension_semantics = [#tpu.dimension_semantics<parallel>], iteration_bounds = array<i64: 1>, scalar_prefetch = 0 : i64, scratch_operands = 0 : i64, tpu.core_type = #tpu.core_type<tc>, window_params = [{pipeline_mode = #tpu.pipeline_mode<synchronous>, transform_indices = @transform_0, window_bounds = array<i64: 2, 64>}, {transform_indices = @transform_1, window_bounds = array<i64: 64, 128>}, {pipeline_mode = #tpu.pipeline_mode<synchronous>, transform_indices = @transform_2, window_bounds = array<i64: 2, 1>}, {transform_indices = @transform_3, window_bounds = array<i64: 2, 128>}]} {
    %c0 = arith.constant 0 : index
    %c0_0 = arith.constant 0 : index
    %0 = vector.load %arg1[%c0, %c0_0] : memref<2x64xbf16, #tpu.memory_space<vmem>>, vector<2x64xbf16>
    %c0_1 = arith.constant 0 : index
    %c0_2 = arith.constant 0 : index
    %1 = vector.load %arg2[%c0_1, %c0_2] : memref<64x128xbf16, #tpu.memory_space<vmem>>, vector<64x128xbf16>
    %cst = arith.constant dense<0.000000e+00> : vector<2x128xf32>
    %2 = tpu.matmul %0, %1, %cst {dimension_numbers = #tpu.dot_dimension_numbers<[1], [0], [0], [1], [0, 0, 1, 1], [], []>} : vector<2x64xbf16>, vector<64x128xbf16>, vector<2x128xf32> -> vector<2x128xf32>
    %c0_3 = arith.constant 0 : index
    %c0_4 = arith.constant 0 : index
    %3 = vector.load %arg3[%c0_3, %c0_4] : memref<2x1xf32, #tpu.memory_space<vmem>>, vector<2x1xf32>
    %4 = vector.broadcast %3 : vector<2x1xf32> to vector<2x128xf32>
    %5 = arith.addf %2, %4 : vector<2x128xf32>
    %c0_5 = arith.constant 0 : index
    %c0_6 = arith.constant 0 : index
    %6 = vector.load %arg4[%c0_5, %c0_6] : memref<2x128xf32, #tpu.memory_space<vmem>>, vector<2x128xf32>
    tpu.vector_store %arg4[%c0_5, %c0_6], %5 {strides = array<i32>} : memref<2x128xf32, #tpu.memory_space<vmem>>, vector<2x128xf32>,
    return
  }
  func.func @transform_0(%arg0: i32) -> (i32, i32) {
    %c0_i32 = arith.constant 0 : i32
    %c0_i32_0 = arith.constant 0 : i32
    %c0_i32_1 = arith.constant 0 : i32
    return %c0_i32, %c0_i32_0 : i32, i32
  }
  func.func @transform_1(%arg0: i32) -> (i32, i32) {
    %c0_i32 = arith.constant 0 : i32
    %c0_i32_0 = arith.constant 0 : i32
    return %c0_i32, %arg0 : i32, i32
  }
  func.func @transform_2(%arg0: i32) -> (i32, i32) {
    %c0_i32 = arith.constant 0 : i32
    %c0_i32_0 = arith.constant 0 : i32
    %c0_i32_1 = arith.constant 0 : i32
    return %c0_i32, %c0_i32_0 : i32, i32
  }
  func.func @transform_3(%arg0: i32) -> (i32, i32) {
    %c0_i32 = arith.constant 0 : i32
    %c0_i32_0 = arith.constant 0 : i32
    return %c0_i32, %arg0 : i32, i32
  }
}

</mosaic_0001>

<llo_original>
// kernel: tpu_custom_call.1
$region0: #{tpu_custom_call.1}
  #allocation0 [shape = 'u32[]', space=smem, size = 0x4, offset = 0x4, fixed_abs, tag = 'smem constant byte address 0x4 - core index']
  #allocation1 [shape = 'u32[144,128]{1,0:T(1,128)}', space=vmem, size = 0x12000, scoped, tag = 'internal scratch']
  %s0 = inlined_call_operand.vmem [shape: bf16[2,64], index: 0, kind: input, shape index: {}]
  %s1 = inlined_call_operand.hbm [shape: bf16[64,128], index: 1, kind: input, shape index: {}]
  %s2 = inlined_call_operand.vmem [shape: f32[2,1], index: 2, kind: input, shape index: {}]
  %s3 = inlined_call_operand.hbm [shape: f32[2,128], index: 3, kind: output, shape index: {}]
  %s4 = sld [smem:[#allocation0]]
  $region26: #{tpu_custom_call.1} parent=0
    _
  %s6 = ssub.s32 1, %s4
  %s7 = scalar_select 0, %s6, %s4
  $region1: #{tpu_custom_call.1} parent=0
    #allocation2 [shape = 'u8[16384]{0}', space=vmem, size = 0x4000, scoped, tag = 'input window, operand 1, single buffered']
    #allocation3 [shape = 's32[1]{0}', space=sflag, size = 0x4, scoped, tag = 'scoped memory for tpu_custom_call.1']
    #allocation4 [shape = 's32[1]{0}', space=sflag, size = 0x4, scoped, tag = 'scoped memory for tpu_custom_call.1']
    #allocation5 [shape = 'u8[1024]{0}', space=vmem, size = 0x400, scoped, tag = 'output window, operand 0, single buffered']
    %8 = vsyncpa [#allocation3], 0
    %9 = vsyncpa [#allocation4], 0
    // Predicated region
    $region2: #{tpu_custom_call.1} parent=1 // pred_check
      _
    $region3: #{tpu_custom_call.1} parent=1 // pred_check_branch
      %11 = sbr.rel (0) target = $region5
    $region4: #{tpu_custom_call.1} parent=1 // pred_region
      _
    $region5: #{tpu_custom_call.1} parent=1 // pred_fallthru
      _
    // Predicated region
    $region6: #{tpu_custom_call.1} parent=1 // pred_check
      _
    $region7: #{tpu_custom_call.1} parent=1 // pred_check_branch
      %13 = sbr.rel (0) target = $region9
    $region8: #{tpu_custom_call.1} parent=1 // pred_region
      %s15 = ssub.s32 512, 512
      %16 = vsyncadd [#allocation3], %s15
      %s17 = sshll.u32 [#allocation2], 4
      %s18 = int_to_ptr.vmem [resolvable:$true] %s17
      %23 = dma.hbm_to_vmem [thread:$0]  %s1, 512, %s18, [#allocation3], 64, 64, 4
    $region9: #{tpu_custom_call.1} parent=1 // pred_fallthru
      _
    // Predicated region
    $region10: #{tpu_custom_call.1} parent=1 // pred_check
      _
    $region11: #{tpu_custom_call.1} parent=1 // pred_check_branch
      %25 = sbr.rel (0) target = $region13
    $region12: #{tpu_custom_call.1} parent=1 // pred_region
      _
    $region13: #{tpu_custom_call.1} parent=1 // pred_fallthru
      _
    // Predicated region
    $region14: #{tpu_custom_call.1} parent=1 // pred_check
      _
    $region15: #{tpu_custom_call.1} parent=1 // pred_check_branch
      %27 = sbr.rel (0) target = $region17
    $region16: #{tpu_custom_call.1} parent=1 // pred_region
      %28 = dma.done [#allocation3], 512
    $region17: #{tpu_custom_call.1} parent=1 // pred_fallthru
      _
    %v30 = vld [vmem:[%s0] sm:$0x1]
    %v31 = vld [vmem:[#allocation2] sm:$0xf]
    %v32 = vld [vmem:[#allocation2 + $0x4] sm:$0xf]
    %v33 = vld [vmem:[#allocation2 + $0x8] sm:$0xf]
    %v34 = vld [vmem:[#allocation2 + $0xc] sm:$0xf]
    %v35 = vld [vmem:[#allocation2 + $0x10] sm:$0xf]
    %v36 = vld [vmem:[#allocation2 + $0x14] sm:$0xf]
    %v37 = vld [vmem:[#allocation2 + $0x18] sm:$0xf]
    %v38 = vld [vmem:[#allocation2 + $0x1c] sm:$0xf]
    %v39 = vld [vmem:[%s2] sm:$0x3]
    %41 = vset.pattern.permute.xlu0 0
    %42 = vperm.xlu0 %41, %v39
    %v43 = vpop.permute.xlu0 %42
    %v53 = vunpack.c.l.b16 %v31
    %v54 = vunpack.c.l.b16 %v32
    %v55 = vunpack.c.l.b16 %v33
    %v56 = vunpack.c.l.b16 %v34
    %v57 = vunpack.c.l.b16 %v35
    %v58 = vunpack.c.l.b16 %v36
    %v59 = vunpack.c.l.b16 %v37
    %v60 = vunpack.c.l.b16 %v38
    %v61 = vpack.c.b16 %v54, %v53
    %v62 = vpack.c.b16 %v56, %v55
    %v63 = vpack.c.b16 %v58, %v57
    %v64 = vpack.c.b16 %v60, %v59
    %vm69 = vcmask 523264
    %v71 = vsel %vm69, %v30, 0
    %73 = vmatprep.subr.bf16.mxu0 0
    %74 = vmatpush1.bf16.msra.mxu0 %v61
    %75 = vmatprep.subr.bf16.mxu0 0
    %76 = vmatpush1.bf16.msra.mxu0 %v62
    %77 = vmatprep.subr.bf16.mxu0 0
    %78 = vmatpush1.bf16.msra.mxu0 %v63
    %79 = vmatprep.subr.bf16.mxu0 0
    %80 = vmatpush1.bf16.msra.mxu0 %v64
    %81 = vmatprep.subr.bf16.mxu0 0
    %82 = vmatpush1.bf16.msra.mxu0 0
    %83 = vmatprep.subr.bf16.mxu0 0
    %84 = vmatpush1.bf16.msra.mxu0 0
    %85 = vmatprep.subr.bf16.mxu0 0
    %86 = vmatpush1.bf16.msra.mxu0 0
    %87 = vmatprep.subr.bf16.mxu0 0
    %88 = vmatpush1.bf16.msra.mxu0 0
    %89 = vmatprep.subr.bf16.mxu0 0
    %90 = vmatpush1.bf16.msra.mxu0 0
    %91 = vmatprep.subr.bf16.mxu0 0
    %92 = vmatpush1.bf16.msra.mxu0 0
    %93 = vmatprep.subr.bf16.mxu0 0
    %94 = vmatpush1.bf16.msra.mxu0 0
    %95 = vmatprep.subr.bf16.mxu0 0
    %96 = vmatpush1.bf16.msra.mxu0 0
    %97 = vmatprep.subr.bf16.mxu0 0
    %98 = vmatpush1.bf16.msra.mxu0 0
    %99 = vmatprep.subr.bf16.mxu0 0
    %100 = vmatpush1.bf16.msra.mxu0 0
    %101 = vmatprep.subr.bf16.mxu0 0
    %102 = vmatpush1.bf16.msra.mxu0 0
    %103 = vmatprep.subr.bf16.mxu0 0
    %104 = vmatpush1.bf16.msra.mxu0 0
    %105 = vmatprep.mubr.bf16.mxu0 0
    %106 = vmatmul.mubr.bf16.gmra.mrb[0].mxu0 %v71
    %v107 = vpop.f32.mrb[0].mxu0
    %v108 = vadd.f32 %v43, %v107
    %v109 = vpop.f32.mrb[0].mxu0
    %v110 = vpop.f32.mrb[0].mxu0
    %v111 = vpop.f32.mrb[0].mxu0
    %112 = vdwg.mxu0
    %113 = vst [vmem:[#allocation5] sm:$0x3] %v108
    // Predicated region
    $region18: #{tpu_custom_call.1} parent=1 // pred_check
      _
    $region19: #{tpu_custom_call.1} parent=1 // pred_check_branch
      %115 = sbr.rel (0) target = $region21
    $region20: #{tpu_custom_call.1} parent=1 // pred_region
      %s117 = ssub.s32 32, 32
      %118 = vsyncadd [#allocation4], %s117
      %s120 = sshll.u32 [#allocation5], 4
      %s121 = int_to_ptr.vmem [resolvable:$true] %s120
      %123 = dma.vmem_to_hbm [thread:$0]  %s121, 32, %s3, [#allocation4]
    $region21: #{tpu_custom_call.1} parent=1 // pred_fallthru
      _
    // Predicated region
    $region22: #{tpu_custom_call.1} parent=1 // pred_check
      _
    $region23: #{tpu_custom_call.1} parent=1 // pred_check_branch
      %125 = sbr.rel (0) target = $region25
    $region24: #{tpu_custom_call.1} parent=1 // pred_region
      %126 = dma.done [#allocation4], 32
    $region25: #{tpu_custom_call.1} parent=1 // pred_fallthru
      _
    %127 = vsyncpa [#allocation3], 1
    %128 = vsyncpa [#allocation4], 1

</llo_original>
